<compile_context>
chip_gen: v5e
topology: v5e:2x2
jax: 0.10.0
libtpu: 0.0.40
codegen_flags: <defaults>
</compile_context>

<pallas_src>
import jax
import jax.numpy as jnp
from jax.experimental import pallas as pl
from jax.experimental.pallas import tpu as pltpu

_MIB = 1024 * 1024


def _tpu_generation():
    """Best-effort TPU generation detection; conservative defaults if unknown."""
    try:
        kind = jax.devices()[0].device_kind.lower()
    except Exception:
        return None
    if "v5 lite" in kind or "v5lite" in kind or "v5e" in kind:
        return "v5e"
    if "v6" in kind:
        return "v6e"
    if "v7" in kind:
        return "v7x"
    return None


def _sublane_multiple(itemsize: int) -> int:
    # Sub-32-bit dtypes pack along sublanes: f32 -> 8 rows, bf16 -> 16, int8/fp8 -> 32.
    return {4: 8, 2: 16, 1: 32}.get(itemsize, 8)


def _choose_block_rows(nc: int, hw: int, itemsize: int, target_bytes: int,
                       want_two_steps: bool) -> int:
    """Pick a row-block size targeting ~target_bytes per input tile."""
    sub = _sublane_multiple(itemsize)
    bytes_per_row = max(1, hw * itemsize)
    rows = max(1, target_bytes // bytes_per_row)
    if rows >= nc:
        # Whole array fits in a single block.  On v7x (2 TCs) split large inputs in
        # two so both TensorCores get a grid step; costs nothing on single-TC chips.
        if want_two_steps and nc * bytes_per_row > 4 * _MIB and nc > sub:
            half = -(-nc // 2)
            rows = -(-half // sub) * sub
            if rows < nc:
                return rows
        return nc
    rows = max(sub, (rows // sub) * sub)  # dtype-aware sublane multiple
    if rows >= nc:
        return nc
    return rows


def _make_kernel(block_rows: int, sub: int, single_block: bool):
    def kernel(x_ref, scale_ref, bias_ref, o_ref):
        # x_ref / o_ref: (block_rows, HW) VMEM tiles.
        # scale_ref / bias_ref: resident (NC_pad, 1) f32 VMEM arrays (constant
        # block index => not re-DMA'd per grid step); slice the current rows.
        if single_block:
            s = scale_ref[...]
            b = bias_ref[...]
        else:
            start = pl.multiple_of(pl.program_id(0) * block_rows, sub)
            s = scale_ref[pl.ds(start, block_rows), :]
            b = bias_ref[pl.ds(start, block_rows), :]
        o_ref[...] = (x_ref[...] * s + b).astype(o_ref.dtype)
    return kernel


def normalize(x: jax.Array, mean: jax.Array, std: jax.Array,
              *, target_block_bytes: int | None = None,
              min_pallas_bytes: int = 256 * 1024,
              force_pallas: bool = False) -> jax.Array:
    """(x - mean.reshape(1,C,1,1)) / std.reshape(1,C,1,1), computed in Pallas."""
    N, C, H, W = x.shape
    assert mean.shape == (C,) and std.shape == (C,)
    NC, HW = N * C, H * W
    itemsize = jnp.dtype(x.dtype).itemsize
    total_bytes = NC * HW * itemsize

    # Precompute per-channel scale/bias in f32 (ULP-level difference vs (x-m)/s).
    mean_f = mean.astype(jnp.float32)
    std_f = std.astype(jnp.float32)
    scale = 1.0 / std_f
    bias = -mean_f / std_f

    if not force_pallas and total_bytes < min_pallas_bytes:
        # Tiny inputs: pallas_call fixed cost dwarfs the HBM traffic; XLA's fused
        # elementwise is strictly faster here.
        out = (x.astype(jnp.float32) * scale.reshape(1, C, 1, 1)
               + bias.reshape(1, C, 1, 1))
        return out.astype(x.dtype)

    gen = _tpu_generation()
    if target_block_bytes is None:
        # Per-generation tile budget: v6e has plenty of VMEM (raise limit below);
        # v7x only has 64 MiB physical per TC, so cap smaller; v5e stays at 2 MiB.
        target_block_bytes = {"v5e": 2 * _MIB, "v6e": 8 * _MIB,
                              "v7x": 4 * _MIB}.get(gen, 2 * _MIB)

    sub = _sublane_multiple(itemsize)
    block_rows = _choose_block_rows(NC, HW, itemsize, target_block_bytes,
                                    want_two_steps=(gen == "v7x"))
    num_blocks = -(-NC // block_rows)
    single_block = num_blocks == 1
    NC_pad = num_blocks * block_rows  # pad scale/bias so in-kernel slices stay in bounds

    scale_rows = jnp.tile(scale, N)   # row order matches NCHW flatten (n-major, c-minor)
    bias_rows = jnp.tile(bias, N)
    if NC_pad > NC:
        pad = NC_pad - NC
        scale_rows = jnp.pad(scale_rows, (0, pad))
        bias_rows = jnp.pad(bias_rows, (0, pad))
    scale_rows = scale_rows.reshape(NC_pad, 1)
    bias_rows = bias_rows.reshape(NC_pad, 1)

    x2 = x.reshape(NC, HW)
    # Lane density: HW % 128 == 0 gives unmasked stores (true for CIFAR / 224x224).
    # Padding HW for odd sizes would add a full HBM copy, so we keep the masked
    # tail path for those instead of pre-padding.

    tile_bytes = block_rows * HW * itemsize
    # Double-buffered input + output tiles, plus tiny resident scale/bias + headroom.
    live_bytes = 4 * tile_bytes + 2 * NC_pad * 4 + _MIB
    vmem_limit = max(32 * _MIB, live_bytes + 8 * _MIB)
    vmem_limit = min(vmem_limit, 48 * _MIB if gen == "v7x" else 100 * _MIB)

    kernel = _make_kernel(block_rows, sub, single_block)

    out2 = pl.pallas_call(
        kernel,
        out_shape=jax.ShapeDtypeStruct((NC, HW), x.dtype),
        grid_spec=pltpu.PrefetchScalarGridSpec(
            num_scalar_prefetch=0,
            grid=(num_blocks,),
            in_specs=[
                # x: lane-dense (block_rows, HW) tiles; last dim equals full dim so
                # the (8, 128) rule is satisfied for any H*W.
                pl.BlockSpec((block_rows, HW), lambda i: (i, 0)),
                # scale / bias: full-array resident blocks (constant block index).
                pl.BlockSpec((NC_pad, 1), lambda i: (0, 0)),
                pl.BlockSpec((NC_pad, 1), lambda i: (0, 0)),
            ],
            out_specs=pl.BlockSpec((block_rows, HW), lambda i: (i, 0)),
        ),
        compiler_params=pltpu.CompilerParams(
            dimension_semantics=("parallel",),
            vmem_limit_bytes=int(vmem_limit),
        ),
    )(x2, scale_rows, bias_rows)

    return out2.reshape(N, C, H, W)


if __name__ == "__main__":
    # Standard CIFAR-10 normalization constants (C = 3, as the module's forward implies).
    mean = jnp.array([0.4914, 0.4822, 0.4465], dtype=jnp.float32)
    std = jnp.array([0.2470, 0.2435, 0.2616], dtype=jnp.float32)

    key = jax.random.PRNGKey(0)

    # Small NCHW input consistent with the module: batch=2, channels=3, 16x16.
    # Force the Pallas path (auto mode would take the tiny-input XLA fallback).
    x = jax.random.uniform(key, (2, 3, 16, 16), dtype=jnp.float32)
    out = jax.block_until_ready(normalize(x, mean, std, force_pallas=True))
    ref = (x - mean.reshape(1, 3, 1, 1)) / std.reshape(1, 3, 1, 1)
    assert out.shape == x.shape and out.dtype == x.dtype
    assert jnp.allclose(out, ref, rtol=1e-5, atol=1e-5)

    # Multi-step grid path: partial final row block + resident scale/bias slicing,
    # forced by a small per-tile byte budget.
    x2 = jax.random.uniform(jax.random.PRNGKey(0), (8, 3, 32, 32), dtype=jnp.float32)
    out2 = jax.block_until_ready(
        normalize(x2, mean, std, target_block_bytes=64 * 1024, force_pallas=True))
    ref2 = (x2 - mean.reshape(1, 3, 1, 1)) / std.reshape(1, 3, 1, 1)
    assert jnp.allclose(out2, ref2, rtol=1e-5, atol=1e-5)

    # Tiny-input XLA fallback path (auto mode).
    out3 = jax.block_until_ready(normalize(x, mean, std))
    assert jnp.allclose(out3, ref, rtol=1e-5, atol=1e-5)

    print("KERNEL_OK")
</pallas_src>

<mosaic_0001>
module attributes {stable_mosaic.version = 11 : i64} {
  func.func @kernel(%arg0: i32, %arg1: memref<6x256xf32, #tpu.memory_space<vmem>>, %arg2: memref<6x1xf32, #tpu.memory_space<vmem>>, %arg3: memref<6x1xf32, #tpu.memory_space<vmem>>, %arg4: memref<6x256xf32, #tpu.memory_space<vmem>>) attributes {dimension_semantics = [#tpu.dimension_semantics<parallel>], iteration_bounds = array<i64: 1>, scalar_prefetch = 0 : i64, scratch_operands = 0 : i64, tpu.core_type = #tpu.core_type<tc>, window_params = [{transform_indices = @transform_0, window_bounds = array<i64: 6, 256>}, {pipeline_mode = #tpu.pipeline_mode<synchronous>, transform_indices = @transform_1, window_bounds = array<i64: 6, 1>}, {pipeline_mode = #tpu.pipeline_mode<synchronous>, transform_indices = @transform_2, window_bounds = array<i64: 6, 1>}, {transform_indices = @transform_3, window_bounds = array<i64: 6, 256>}]} {
    %c0 = arith.constant 0 : index
    %c0_0 = arith.constant 0 : index
    %0 = vector.load %arg2[%c0, %c0_0] : memref<6x1xf32, #tpu.memory_space<vmem>>, vector<6x1xf32>
    %c0_1 = arith.constant 0 : index
    %c0_2 = arith.constant 0 : index
    %1 = vector.load %arg3[%c0_1, %c0_2] : memref<6x1xf32, #tpu.memory_space<vmem>>, vector<6x1xf32>
    %c0_3 = arith.constant 0 : index
    %c0_4 = arith.constant 0 : index
    %2 = vector.load %arg1[%c0_3, %c0_4] : memref<6x256xf32, #tpu.memory_space<vmem>>, vector<6x256xf32>
    %3 = vector.broadcast %0 : vector<6x1xf32> to vector<6x256xf32>
    %4 = arith.mulf %2, %3 : vector<6x256xf32>
    %5 = vector.broadcast %1 : vector<6x1xf32> to vector<6x256xf32>
    %6 = arith.addf %4, %5 : vector<6x256xf32>
    %c0_5 = arith.constant 0 : index
    %c0_6 = arith.constant 0 : index
    %7 = vector.load %arg4[%c0_5, %c0_6] : memref<6x256xf32, #tpu.memory_space<vmem>>, vector<6x256xf32>
    tpu.vector_store %arg4[%c0_5, %c0_6], %6 {strides = array<i32>} : memref<6x256xf32, #tpu.memory_space<vmem>>, vector<6x256xf32>,
    return
  }
  func.func @transform_0(%arg0: i32) -> (i32, i32) {
    %c0_i32 = arith.constant 0 : i32
    %c0_i32_0 = arith.constant 0 : i32
    return %arg0, %c0_i32 : i32, i32
  }
  func.func @transform_1(%arg0: i32) -> (i32, i32) {
    %c0_i32 = arith.constant 0 : i32
    %c0_i32_0 = arith.constant 0 : i32
    %c0_i32_1 = arith.constant 0 : i32
    return %c0_i32, %c0_i32_0 : i32, i32
  }
  func.func @transform_2(%arg0: i32) -> (i32, i32) {
    %c0_i32 = arith.constant 0 : i32
    %c0_i32_0 = arith.constant 0 : i32
    %c0_i32_1 = arith.constant 0 : i32
    return %c0_i32, %c0_i32_0 : i32, i32
  }
  func.func @transform_3(%arg0: i32) -> (i32, i32) {
    %c0_i32 = arith.constant 0 : i32
    %c0_i32_0 = arith.constant 0 : i32
    return %arg0, %c0_i32 : i32, i32
  }
}

</mosaic_0001>

<llo_original>
// kernel: tpu_custom_call.1
$region0: #{tpu_custom_call.1}
  #allocation0 [shape = 'u32[]', space=smem, size = 0x4, offset = 0x4, fixed_abs, tag = 'smem constant byte address 0x4 - core index']
  #allocation1 [shape = 'u32[72,128]{1,0:T(1,128)}', space=vmem, size = 0x9000, scoped, tag = 'internal scratch']
  %s0 = inlined_call_operand.vmem [shape: f32[6,256], index: 0, kind: input, shape index: {}]
  %s1 = inlined_call_operand.vmem [shape: f32[6,1], index: 1, kind: input, shape index: {}]
  %s2 = inlined_call_operand.vmem [shape: f32[6,1], index: 2, kind: input, shape index: {}]
  %s3 = inlined_call_operand.hbm [shape: f32[6,256], index: 3, kind: output, shape index: {}]
  %s4 = sld [smem:[#allocation0]]
  $region22: #{tpu_custom_call.1} parent=0
    _
  %s6 = ssub.s32 1, %s4
  %s7 = scalar_select 0, %s6, %s4
  $region1: #{tpu_custom_call.1} parent=0
    #allocation2 [shape = 'u8[8192]{0}', space=vmem, size = 0x2000, scoped, tag = 'output window, operand 0, single buffered']
    #allocation3 [shape = 's32[1]{0}', space=sflag, size = 0x4, scoped, tag = 'scoped memory for tpu_custom_call.1']
    %8 = vsyncpa [#allocation3], 0
    // Predicated region
    $region2: #{tpu_custom_call.1} parent=1 // pred_check
      _
    $region3: #{tpu_custom_call.1} parent=1 // pred_check_branch
      %10 = sbr.rel (0) target = $region5
    $region4: #{tpu_custom_call.1} parent=1 // pred_region
      _
    $region5: #{tpu_custom_call.1} parent=1 // pred_fallthru
      _
    // Predicated region
    $region6: #{tpu_custom_call.1} parent=1 // pred_check
      _
    $region7: #{tpu_custom_call.1} parent=1 // pred_check_branch
      %12 = sbr.rel (0) target = $region9
    $region8: #{tpu_custom_call.1} parent=1 // pred_region
      _
    $region9: #{tpu_custom_call.1} parent=1 // pred_fallthru
      _
    // Predicated region
    $region10: #{tpu_custom_call.1} parent=1 // pred_check
      _
    $region11: #{tpu_custom_call.1} parent=1 // pred_check_branch
      %14 = sbr.rel (0) target = $region13
    $region12: #{tpu_custom_call.1} parent=1 // pred_region
      _
    $region13: #{tpu_custom_call.1} parent=1 // pred_fallthru
      _
    %v15 = vld [vmem:[%s1] sm:$0x3f]
    %v16 = vld [vmem:[%s2] sm:$0x3f]
    %v17 = vld [vmem:[%s0] sm:$0x3f]
    %v18 = vld [vmem:[%s0 + $0x8] sm:$0x3f]
    %20 = vset.pattern.permute.xlu0 0
    %21 = vperm.xlu0 %20, %v15
    %v22 = vpop.permute.xlu0 %21
    %v24 = vmul.f32 %v17, %v22
    %v25 = vmul.f32 %v18, %v22
    %27 = vset.pattern.permute.xlu0 0
    %28 = vperm.xlu0 %27, %v16
    %v29 = vpop.permute.xlu0 %28
    %v31 = vadd.f32 %v24, %v29
    %v32 = vadd.f32 %v25, %v29
    %33 = vst [vmem:[#allocation2] sm:$0x3f] %v31
    %34 = vst [vmem:[#allocation2 + $0x8] sm:$0x3f] %v32
    // Predicated region
    $region14: #{tpu_custom_call.1} parent=1 // pred_check
      _
    $region15: #{tpu_custom_call.1} parent=1 // pred_check_branch
      %36 = sbr.rel (0) target = $region17
    $region16: #{tpu_custom_call.1} parent=1 // pred_region
      %38 = vsyncadd [#allocation3], 0
      %s40 = sshll.u32 [#allocation2], 4
      %s41 = int_to_ptr.vmem [resolvable:$true] %s40
      %s42 = sshll.u32 %s3, 4
      %s43 = int_to_ptr.hbm [resolvable:$true] %s42
      %45 = dma.vmem_to_hbm [thread:$0]  %s41, 256, %s43, [#allocation3]
    $region17: #{tpu_custom_call.1} parent=1 // pred_fallthru
      _
    // Predicated region
    $region18: #{tpu_custom_call.1} parent=1 // pred_check
      _
    $region19: #{tpu_custom_call.1} parent=1 // pred_check_branch
      %47 = sbr.rel (0) target = $region21
    $region20: #{tpu_custom_call.1} parent=1 // pred_region
      %49 = dma.done [#allocation3], 256
    $region21: #{tpu_custom_call.1} parent=1 // pred_fallthru
      _
    %50 = vsyncpa [#allocation3], 1

</llo_original>
